<compile_context>
chip_gen: v5e
topology: v5e:2x2
jax: 0.10.0
libtpu: 0.0.40
codegen_flags: <defaults>
</compile_context>

<pallas_src>
import math

import jax
import jax.numpy as jnp
from jax.experimental import pallas as pl
from jax.experimental.pallas import tpu as pltpu

IN_FEATURES = 11
HIDDEN = 256
OUT_FEATURES = 3


def qnet_kernel(xt_ref, w1t_ref, b1_ref, w2t_ref, b2_ref, ot_ref):
    # xt_ref : (11, TB)   bf16   (batch on the lane axis -> lane-dense load)
    # w1t_ref: (256, 11)  bf16   (resident)
    # b1_ref : (256, 1)   f32    (resident)
    # w2t_ref: (3, 256)   bf16   (resident)
    # b2_ref : (3, 1)     f32    (resident)
    # ot_ref : (3, TB)    f32    (lane-dense store)
    h = jnp.dot(w1t_ref[...], xt_ref[...], preferred_element_type=jnp.float32)
    h = jnp.maximum(h + b1_ref[...], 0.0)  # bias + ReLU in f32 on the VPU
    out = jnp.dot(w2t_ref[...], h.astype(jnp.bfloat16),
                  preferred_element_type=jnp.float32)
    ot_ref[...] = out + b2_ref[...]


def qnetwork_forward(x, w1, b1, w2, b2, *, tb=2048):
    """x: (B, 11) float32.  w1: (11, 256), b1: (1, 256), w2: (256, 3), b2: (1, 3).
    Returns (B, 3) float32 = relu(x @ w1 + b1) @ w2 + b2 (bf16 MXU inputs, f32 accumulate)."""
    B = x.shape[0]
    # Batch tile: multiple of 128 (lane width).  Default 2048 keeps the (256, TB)
    # f32 hidden activation at ~2 MiB, well inside v7x's 64 MiB / default scoped VMEM.
    tb = min(tb, pl.cdiv(B, 128) * 128)
    Bp = pl.cdiv(B, tb) * tb
    grid = (Bp // tb,)

    # Batch-on-lanes layout; pad batch to a tile multiple (padded columns are
    # computed and then sliced away).
    xt = jnp.zeros((IN_FEATURES, Bp), jnp.bfloat16).at[:, :B].set(
        x.T.astype(jnp.bfloat16))
    w1t = w1.T.astype(jnp.bfloat16)                        # (256, 11)
    w2t = w2.T.astype(jnp.bfloat16)                        # (3, 256)
    b1t = jnp.reshape(b1, (HIDDEN, 1)).astype(jnp.float32)
    b2t = jnp.reshape(b2, (OUT_FEATURES, 1)).astype(jnp.float32)

    resident = lambda i: (0, 0)  # same block every step -> weights stay in VMEM

    out_t = pl.pallas_call(
        qnet_kernel,
        out_shape=jax.ShapeDtypeStruct((OUT_FEATURES, Bp), jnp.float32),
        grid_spec=pltpu.PrefetchScalarGridSpec(
            num_scalar_prefetch=0,
            grid=grid,
            in_specs=[
                pl.BlockSpec((IN_FEATURES, tb), lambda i: (0, i)),   # x stream
                pl.BlockSpec((HIDDEN, IN_FEATURES), resident),       # W1^T
                pl.BlockSpec((HIDDEN, 1), resident),                 # b1
                pl.BlockSpec((OUT_FEATURES, HIDDEN), resident),      # W2^T
                pl.BlockSpec((OUT_FEATURES, 1), resident),           # b2
            ],
            out_specs=pl.BlockSpec((OUT_FEATURES, tb), lambda i: (0, i)),
        ),
        compiler_params=pltpu.CompilerParams(
            dimension_semantics=("parallel",),   # shards batch tiles across v7x's 2 TCs
        ),
    )(xt, w1t, b1t, w2t, b2t)

    return out_t[:, :B].T


def init_params(key):
    """Deterministic init mimicking PyTorch nn.Linear default U(-1/sqrt(fan_in), 1/sqrt(fan_in))."""
    k1, k2, k3, k4 = jax.random.split(key, 4)
    bound1 = 1.0 / math.sqrt(IN_FEATURES)
    bound2 = 1.0 / math.sqrt(HIDDEN)
    w1 = jax.random.uniform(k1, (IN_FEATURES, HIDDEN), jnp.float32, -bound1, bound1)
    b1 = jax.random.uniform(k2, (1, HIDDEN), jnp.float32, -bound1, bound1)
    w2 = jax.random.uniform(k3, (HIDDEN, OUT_FEATURES), jnp.float32, -bound2, bound2)
    b2 = jax.random.uniform(k4, (1, OUT_FEATURES), jnp.float32, -bound2, bound2)
    return w1, b1, w2, b2


def _reference(x, w1, b1, w2, b2, emulate_bf16=True):
    if emulate_bf16:
        w1 = w1.astype(jnp.bfloat16).astype(jnp.float32)
        w2 = w2.astype(jnp.bfloat16).astype(jnp.float32)
        h = jnp.maximum(x @ w1 + b1, 0.0).astype(jnp.bfloat16).astype(jnp.float32)
    else:
        h = jnp.maximum(x @ w1 + b1, 0.0)
    return h @ w2 + b2


if __name__ == "__main__":
    key = jax.random.PRNGKey(0)
    k_in, k_in2, k_params = jax.random.split(key, 3)
    w1, b1, w2, b2 = init_params(k_params)

    # Boolean inputs (as the module's docstring describes), small batch.
    B = 8
    x = jax.random.bernoulli(k_in, 0.5, (B, IN_FEATURES)).astype(jnp.float32)
    out = jax.block_until_ready(qnetwork_forward(x, w1, b1, w2, b2))
    assert out.shape == (B, OUT_FEATURES)
    assert jnp.allclose(out, _reference(x, w1, b1, w2, b2), atol=1e-3, rtol=1e-3), \
        "mismatch vs bf16-emulated reference"
    assert jnp.allclose(out, _reference(x, w1, b1, w2, b2, emulate_bf16=False),
                        atol=1e-1, rtol=1e-1), "mismatch vs f32 reference"

    # Exercise the multi-step grid + batch padding path (3 tiles of 128).
    B2 = 300
    x2 = jax.random.bernoulli(k_in2, 0.5, (B2, IN_FEATURES)).astype(jnp.float32)
    out2 = jax.block_until_ready(qnetwork_forward(x2, w1, b1, w2, b2, tb=128))
    assert out2.shape == (B2, OUT_FEATURES)
    assert jnp.allclose(out2, _reference(x2, w1, b1, w2, b2), atol=1e-3, rtol=1e-3), \
        "mismatch vs bf16-emulated reference (tiled)"

    print("KERNEL_OK")
</pallas_src>

<mosaic_0001>
module attributes {stable_mosaic.version = 11 : i64} {
  func.func @qnet_kernel(%arg0: i32, %arg1: memref<11x128xbf16, #tpu.memory_space<vmem>>, %arg2: memref<256x11xbf16, #tpu.memory_space<vmem>>, %arg3: memref<256x1xf32, #tpu.memory_space<vmem>>, %arg4: memref<3x256xbf16, #tpu.memory_space<vmem>>, %arg5: memref<3x1xf32, #tpu.memory_space<vmem>>, %arg6: memref<3x128xf32, #tpu.memory_space<vmem>>) attributes {dimension_semantics = [#tpu.dimension_semantics<parallel>], iteration_bounds = array<i64: 1>, scalar_prefetch = 0 : i64, scratch_operands = 0 : i64, tpu.core_type = #tpu.core_type<tc>, window_params = [{transform_indices = @transform_0, window_bounds = array<i64: 11, 128>}, {pipeline_mode = #tpu.pipeline_mode<synchronous>, transform_indices = @transform_1, window_bounds = array<i64: 256, 11>}, {pipeline_mode = #tpu.pipeline_mode<synchronous>, transform_indices = @transform_2, window_bounds = array<i64: 256, 1>}, {pipeline_mode = #tpu.pipeline_mode<synchronous>, transform_indices = @transform_3, window_bounds = array<i64: 3, 256>}, {pipeline_mode = #tpu.pipeline_mode<synchronous>, transform_indices = @transform_4, window_bounds = array<i64: 3, 1>}, {transform_indices = @transform_5, window_bounds = array<i64: 3, 128>}]} {
    %c0 = arith.constant 0 : index
    %c0_0 = arith.constant 0 : index
    %0 = vector.load %arg2[%c0, %c0_0] : memref<256x11xbf16, #tpu.memory_space<vmem>>, vector<256x11xbf16>
    %c0_1 = arith.constant 0 : index
    %c0_2 = arith.constant 0 : index
    %1 = vector.load %arg1[%c0_1, %c0_2] : memref<11x128xbf16, #tpu.memory_space<vmem>>, vector<11x128xbf16>
    %cst = arith.constant dense<0.000000e+00> : vector<256x128xf32>
    %2 = tpu.matmul %0, %1, %cst {dimension_numbers = #tpu.dot_dimension_numbers<[1], [0], [0], [1], [0, 0, 1, 1], [], []>} : vector<256x11xbf16>, vector<11x128xbf16>, vector<256x128xf32> -> vector<256x128xf32>
    %c0_3 = arith.constant 0 : index
    %c0_4 = arith.constant 0 : index
    %3 = vector.load %arg3[%c0_3, %c0_4] : memref<256x1xf32, #tpu.memory_space<vmem>>, vector<256x1xf32>
    %4 = vector.broadcast %3 : vector<256x1xf32> to vector<256x128xf32>
    %5 = arith.addf %2, %4 : vector<256x128xf32>
    %cst_5 = arith.constant 0.000000e+00 : f32
    %6 = vector.broadcast %cst_5 : f32 to vector<256x128xf32>
    %7 = arith.maximumf %5, %6 : vector<256x128xf32>
    %c0_6 = arith.constant 0 : index
    %c0_7 = arith.constant 0 : index
    %8 = vector.load %arg4[%c0_6, %c0_7] : memref<3x256xbf16, #tpu.memory_space<vmem>>, vector<3x256xbf16>
    %9 = arith.truncf %7 : vector<256x128xf32> to vector<256x128xbf16>
    %cst_8 = arith.constant dense<0.000000e+00> : vector<3x128xf32>
    %10 = tpu.matmul %8, %9, %cst_8 {dimension_numbers = #tpu.dot_dimension_numbers<[1], [0], [0], [1], [0, 0, 1, 1], [], []>} : vector<3x256xbf16>, vector<256x128xbf16>, vector<3x128xf32> -> vector<3x128xf32>
    %c0_9 = arith.constant 0 : index
    %c0_10 = arith.constant 0 : index
    %11 = vector.load %arg5[%c0_9, %c0_10] : memref<3x1xf32, #tpu.memory_space<vmem>>, vector<3x1xf32>
    %12 = vector.broadcast %11 : vector<3x1xf32> to vector<3x128xf32>
    %13 = arith.addf %10, %12 : vector<3x128xf32>
    %c0_11 = arith.constant 0 : index
    %c0_12 = arith.constant 0 : index
    %14 = vector.load %arg6[%c0_11, %c0_12] : memref<3x128xf32, #tpu.memory_space<vmem>>, vector<3x128xf32>
    tpu.vector_store %arg6[%c0_11, %c0_12], %13 {strides = array<i32>} : memref<3x128xf32, #tpu.memory_space<vmem>>, vector<3x128xf32>,
    return
  }
  func.func @transform_0(%arg0: i32) -> (i32, i32) {
    %c0_i32 = arith.constant 0 : i32
    %c0_i32_0 = arith.constant 0 : i32
    return %c0_i32, %arg0 : i32, i32
  }
  func.func @transform_1(%arg0: i32) -> (i32, i32) {
    %c0_i32 = arith.constant 0 : i32
    %c0_i32_0 = arith.constant 0 : i32
    %c0_i32_1 = arith.constant 0 : i32
    return %c0_i32, %c0_i32_0 : i32, i32
  }
  func.func @transform_2(%arg0: i32) -> (i32, i32) {
    %c0_i32 = arith.constant 0 : i32
    %c0_i32_0 = arith.constant 0 : i32
    %c0_i32_1 = arith.constant 0 : i32
    return %c0_i32, %c0_i32_0 : i32, i32
  }
  func.func @transform_3(%arg0: i32) -> (i32, i32) {
    %c0_i32 = arith.constant 0 : i32
    %c0_i32_0 = arith.constant 0 : i32
    %c0_i32_1 = arith.constant 0 : i32
    return %c0_i32, %c0_i32_0 : i32, i32
  }
  func.func @transform_4(%arg0: i32) -> (i32, i32) {
    %c0_i32 = arith.constant 0 : i32
    %c0_i32_0 = arith.constant 0 : i32
    %c0_i32_1 = arith.constant 0 : i32
    return %c0_i32, %c0_i32_0 : i32, i32
  }
  func.func @transform_5(%arg0: i32) -> (i32, i32) {
    %c0_i32 = arith.constant 0 : i32
    %c0_i32_0 = arith.constant 0 : i32
    return %c0_i32, %arg0 : i32, i32
  }
}

</mosaic_0001>

<llo_original>
// kernel: tpu_custom_call.1
$region0: #{tpu_custom_call.1}
  #allocation0 [shape = 'u32[]', space=smem, size = 0x4, offset = 0x4, fixed_abs, tag = 'smem constant byte address 0x4 - core index']
  #allocation1 [shape = 'u32[72,128]{1,0:T(1,128)}', space=vmem, size = 0x9000, scoped, tag = 'internal scratch']
  %s0 = inlined_call_operand.vmem [shape: bf16[11,128], index: 0, kind: input, shape index: {}]
  %s1 = inlined_call_operand.vmem [shape: bf16[256,11], index: 1, kind: input, shape index: {}]
  %s2 = inlined_call_operand.vmem [shape: f32[256,1], index: 2, kind: input, shape index: {}]
  %s3 = inlined_call_operand.vmem [shape: bf16[3,256], index: 3, kind: input, shape index: {}]
  %s4 = inlined_call_operand.vmem [shape: f32[3,1], index: 4, kind: input, shape index: {}]
  %s5 = inlined_call_operand.hbm [shape: f32[3,128], index: 5, kind: output, shape index: {}]
  %s6 = sld [smem:[#allocation0]]
  $region30: #{tpu_custom_call.1} parent=0
    _
  %s8 = ssub.s32 1, %s6
  %s9 = scalar_select 0, %s8, %s6
  $region1: #{tpu_custom_call.1} parent=0
    #allocation2 [shape = 'u8[2048]{0}', space=vmem, size = 0x800, scoped, tag = 'output window, operand 0, single buffered']
    #allocation3 [shape = 's32[1]{0}', space=sflag, size = 0x4, scoped, tag = 'scoped memory for tpu_custom_call.1']
    %10 = vsyncpa [#allocation3], 0
    // Predicated region
    $region2: #{tpu_custom_call.1} parent=1 // pred_check
      _
    $region3: #{tpu_custom_call.1} parent=1 // pred_check_branch
      %12 = sbr.rel (0) target = $region5
    $region4: #{tpu_custom_call.1} parent=1 // pred_region
      _
    $region5: #{tpu_custom_call.1} parent=1 // pred_fallthru
      _
    // Predicated region
    $region6: #{tpu_custom_call.1} parent=1 // pred_check
      _
    $region7: #{tpu_custom_call.1} parent=1 // pred_check_branch
      %14 = sbr.rel (0) target = $region9
    $region8: #{tpu_custom_call.1} parent=1 // pred_region
      _
    $region9: #{tpu_custom_call.1} parent=1 // pred_fallthru
      _
    // Predicated region
    $region10: #{tpu_custom_call.1} parent=1 // pred_check
      _
    $region11: #{tpu_custom_call.1} parent=1 // pred_check_branch
      %16 = sbr.rel (0) target = $region13
    $region12: #{tpu_custom_call.1} parent=1 // pred_region
      _
    $region13: #{tpu_custom_call.1} parent=1 // pred_fallthru
      _
    // Predicated region
    $region14: #{tpu_custom_call.1} parent=1 // pred_check
      _
    $region15: #{tpu_custom_call.1} parent=1 // pred_check_branch
      %18 = sbr.rel (0) target = $region17
    $region16: #{tpu_custom_call.1} parent=1 // pred_region
      _
    $region17: #{tpu_custom_call.1} parent=1 // pred_fallthru
      _
    // Predicated region
    $region18: #{tpu_custom_call.1} parent=1 // pred_check
      _
    $region19: #{tpu_custom_call.1} parent=1 // pred_check_branch
      %20 = sbr.rel (0) target = $region21
    $region20: #{tpu_custom_call.1} parent=1 // pred_region
      _
    $region21: #{tpu_custom_call.1} parent=1 // pred_fallthru
      _
    %v22 = vld [vmem:[%s1] sm:$0xf]
    %v23 = vld [vmem:[%s1 + $0x4] sm:$0xf]
    %v24 = vld [vmem:[%s1 + $0x8] sm:$0xf]
    %v25 = vld [vmem:[%s1 + $0xc] sm:$0xf]
    %v26 = vld [vmem:[%s1 + $0x10] sm:$0xf]
    %v27 = vld [vmem:[%s1 + $0x14] sm:$0xf]
    %v28 = vld [vmem:[%s1 + $0x18] sm:$0xf]
    %v29 = vld [vmem:[%s1 + $0x1c] sm:$0xf]
    %v30 = vld [vmem:[%s1 + $0x20] sm:$0xf]
    %v31 = vld [vmem:[%s1 + $0x24] sm:$0xf]
    %v32 = vld [vmem:[%s1 + $0x28] sm:$0xf]
    %v33 = vld [vmem:[%s1 + $0x2c] sm:$0xf]
    %v34 = vld [vmem:[%s1 + $0x30] sm:$0xf]
    %v35 = vld [vmem:[%s1 + $0x34] sm:$0xf]
    %v36 = vld [vmem:[%s1 + $0x38] sm:$0xf]
    %v37 = vld [vmem:[%s1 + $0x3c] sm:$0xf]
    %v38 = vld [vmem:[%s1 + $0x40] sm:$0xf]
    %v39 = vld [vmem:[%s1 + $0x44] sm:$0xf]
    %v40 = vld [vmem:[%s1 + $0x48] sm:$0xf]
    %v41 = vld [vmem:[%s1 + $0x4c] sm:$0xf]
    %v42 = vld [vmem:[%s1 + $0x50] sm:$0xf]
    %v43 = vld [vmem:[%s1 + $0x54] sm:$0xf]
    %v44 = vld [vmem:[%s1 + $0x58] sm:$0xf]
    %v45 = vld [vmem:[%s1 + $0x5c] sm:$0xf]
    %v46 = vld [vmem:[%s1 + $0x60] sm:$0xf]
    %v47 = vld [vmem:[%s1 + $0x64] sm:$0xf]
    %v48 = vld [vmem:[%s1 + $0x68] sm:$0xf]
    %v49 = vld [vmem:[%s1 + $0x6c] sm:$0xf]
    %v50 = vld [vmem:[%s1 + $0x70] sm:$0xf]
    %v51 = vld [vmem:[%s1 + $0x74] sm:$0xf]
    %v52 = vld [vmem:[%s1 + $0x78] sm:$0xf]
    %v53 = vld [vmem:[%s1 + $0x7c] sm:$0xf]
    %v54 = vld [vmem:[%s0] sm:$0xf]
    %v55 = vld [vmem:[%s0 + $0x4] sm:$0x3]
    %v56 = vld [vmem:[%s2] sm:$0xff]
    %v57 = vld [vmem:[%s2 + $0x8] sm:$0xff]
    %v58 = vld [vmem:[%s2 + $0x10] sm:$0xff]
    %v59 = vld [vmem:[%s2 + $0x18] sm:$0xff]
    %v60 = vld [vmem:[%s2 + $0x20] sm:$0xff]
    %v61 = vld [vmem:[%s2 + $0x28] sm:$0xff]
    %v62 = vld [vmem:[%s2 + $0x30] sm:$0xff]
    %v63 = vld [vmem:[%s2 + $0x38] sm:$0xff]
    %v64 = vld [vmem:[%s2 + $0x40] sm:$0xff]
    %v65 = vld [vmem:[%s2 + $0x48] sm:$0xff]
    %v66 = vld [vmem:[%s2 + $0x50] sm:$0xff]
    %v67 = vld [vmem:[%s2 + $0x58] sm:$0xff]
    %v68 = vld [vmem:[%s2 + $0x60] sm:$0xff]
    %v69 = vld [vmem:[%s2 + $0x68] sm:$0xff]
    %v70 = vld [vmem:[%s2 + $0x70] sm:$0xff]
    %v71 = vld [vmem:[%s2 + $0x78] sm:$0xff]
    %v72 = vld [vmem:[%s2 + $0x80] sm:$0xff]
    %v73 = vld [vmem:[%s2 + $0x88] sm:$0xff]
    %v74 = vld [vmem:[%s2 + $0x90] sm:$0xff]
    %v75 = vld [vmem:[%s2 + $0x98] sm:$0xff]
    %v76 = vld [vmem:[%s2 + $0xa0] sm:$0xff]
    %v77 = vld [vmem:[%s2 + $0xa8] sm:$0xff]
    %v78 = vld [vmem:[%s2 + $0xb0] sm:$0xff]
    %v79 = vld [vmem:[%s2 + $0xb8] sm:$0xff]
    %v80 = vld [vmem:[%s2 + $0xc0] sm:$0xff]
    %v81 = vld [vmem:[%s2 + $0xc8] sm:$0xff]
    %v82 = vld [vmem:[%s2 + $0xd0] sm:$0xff]
    %v83 = vld [vmem:[%s2 + $0xd8] sm:$0xff]
    %v84 = vld [vmem:[%s2 + $0xe0] sm:$0xff]
    %v85 = vld [vmem:[%s2 + $0xe8] sm:$0xff]
    %v86 = vld [vmem:[%s2 + $0xf0] sm:$0xff]
    %v87 = vld [vmem:[%s2 + $0xf8] sm:$0xff]
    %89 = vset.pattern.permute.xlu0 0
    %90 = vperm.xlu0 %89, %v56
    %v91 = vpop.permute.xlu0 %90
    %94 = vset.pattern.permute.xlu0 0
    %95 = vperm.xlu0 %94, %v57
    %v96 = vpop.permute.xlu0 %95
    %99 = vset.pattern.permute.xlu0 0
    %100 = vperm.xlu0 %99, %v58
    %v101 = vpop.permute.xlu0 %100
    %104 = vset.pattern.permute.xlu0 0
    %105 = vperm.xlu0 %104, %v59
    %v106 = vpop.permute.xlu0 %105
    %109 = vset.pattern.permute.xlu0 0
    %110 = vperm.xlu0 %109, %v60
    %v111 = vpop.permute.xlu0 %110
    %114 = vset.pattern.permute.xlu0 0
    %115 = vperm.xlu0 %114, %v61
    %v116 = vpop.permute.xlu0 %115
    %119 = vset.pattern.permute.xlu0 0
    %120 = vperm.xlu0 %119, %v62
    %v121 = vpop.permute.xlu0 %120
    %124 = vset.pattern.permute.xlu0 0
    %125 = vperm.xlu0 %124, %v63
    %v126 = vpop.permute.xlu0 %125
    %129 = vset.pattern.permute.xlu0 0
    %130 = vperm.xlu0 %129, %v64
    %v131 = vpop.permute.xlu0 %130
    %134 = vset.pattern.permute.xlu0 0
    %135 = vperm.xlu0 %134, %v65
    %v136 = vpop.permute.xlu0 %135
    %139 = vset.pattern.permute.xlu0 0
    %140 = vperm.xlu0 %139, %v66
    %v141 = vpop.permute.xlu0 %140
    %144 = vset.pattern.permute.xlu0 0
    %145 = vperm.xlu0 %144, %v67
    %v146 = vpop.permute.xlu0 %145
    %149 = vset.pattern.permute.xlu0 0
    %150 = vperm.xlu0 %149, %v68
    %v151 = vpop.permute.xlu0 %150
    %154 = vset.pattern.permute.xlu0 0
    %155 = vperm.xlu0 %154, %v69
    %v156 = vpop.permute.xlu0 %155
    %159 = vset.pattern.permute.xlu0 0
    %160 = vperm.xlu0 %159, %v70
    %v161 = vpop.permute.xlu0 %160
    %164 = vset.pattern.permute.xlu0 0
    %165 = vperm.xlu0 %164, %v71
    %v166 = vpop.permute.xlu0 %165
    %169 = vset.pattern.permute.xlu0 0
    %170 = vperm.xlu0 %169, %v72
    %v171 = vpop.permute.xlu0 %170
    %174 = vset.pattern.permute.xlu0 0
    %175 = vperm.xlu0 %174, %v73
    %v176 = vpop.permute.xlu0 %175
    %179 = vset.pattern.permute.xlu0 0
    %180 = vperm.xlu0 %179, %v74
    %v181 = vpop.permute.xlu0 %180
    %184 = vset.pattern.permute.xlu0 0
    %185 = vperm.xlu0 %184, %v75
    %v186 = vpop.permute.xlu0 %185
    %189 = vset.pattern.permute.xlu0 0
    %190 = vperm.xlu0 %189, %v76
    %v191 = vpop.permute.xlu0 %190
    %194 = vset.pattern.permute.xlu0 0
    %195 = vperm.xlu0 %194, %v77
    %v196 = vpop.permute.xlu0 %195
    %199 = vset.pattern.permute.xlu0 0
    %200 = vperm.xlu0 %199, %v78
    %v201 = vpop.permute.xlu0 %200
    %204 = vset.pattern.permute.xlu0 0
    %205 = vperm.xlu0 %204, %v79
    %v206 = vpop.permute.xlu0 %205
    %209 = vset.pattern.permute.xlu0 0
    %210 = vperm.xlu0 %209, %v80
    %v211 = vpop.permute.xlu0 %210
    %214 = vset.pattern.permute.xlu0 0
    %215 = vperm.xlu0 %214, %v81
    %v216 = vpop.permute.xlu0 %215
    %219 = vset.pattern.permute.xlu0 0
    %220 = vperm.xlu0 %219, %v82
    %v221 = vpop.permute.xlu0 %220
    %224 = vset.pattern.permute.xlu0 0
    %225 = vperm.xlu0 %224, %v83
    %v226 = vpop.permute.xlu0 %225
    %229 = vset.pattern.permute.xlu0 0
    %230 = vperm.xlu0 %229, %v84
    %v231 = vpop.permute.xlu0 %230
    %234 = vset.pattern.permute.xlu0 0
    %235 = vperm.xlu0 %234, %v85
    %v236 = vpop.permute.xlu0 %235
    %239 = vset.pattern.permute.xlu0 0
    %240 = vperm.xlu0 %239, %v86
    %v241 = vpop.permute.xlu0 %240
    %244 = vset.pattern.permute.xlu0 0
    %245 = vperm.xlu0 %244, %v87
    %v246 = vpop.permute.xlu0 %245
    %v280 = vunpack.c.l.b16 %v22
    %v281 = vunpack.c.l.b16 %v23
    %v282 = vunpack.c.l.b16 %v24
    %v283 = vunpack.c.l.b16 %v25
    %v284 = vunpack.c.l.b16 %v26
    %v285 = vunpack.c.l.b16 %v27
    %v286 = vunpack.c.l.b16 %v28
    %v287 = vunpack.c.l.b16 %v29
    %v288 = vunpack.c.l.b16 %v30
    %v289 = vunpack.c.l.b16 %v31
    %v290 = vunpack.c.l.b16 %v32
    %v291 = vunpack.c.l.b16 %v33
    %v292 = vunpack.c.l.b16 %v34
    %v293 = vunpack.c.l.b16 %v35
    %v294 = vunpack.c.l.b16 %v36
    %v295 = vunpack.c.l.b16 %v37
    %v296 = vunpack.c.l.b16 %v38
    %v297 = vunpack.c.l.b16 %v39
    %v298 = vunpack.c.l.b16 %v40
    %v299 = vunpack.c.l.b16 %v41
    %v300 = vunpack.c.l.b16 %v42
    %v301 = vunpack.c.l.b16 %v43
    %v302 = vunpack.c.l.b16 %v44
    %v303 = vunpack.c.l.b16 %v45
    %v304 = vunpack.c.l.b16 %v46
    %v305 = vunpack.c.l.b16 %v47
    %v306 = vunpack.c.l.b16 %v48
    %v307 = vunpack.c.l.b16 %v49
    %v308 = vunpack.c.l.b16 %v50
    %v309 = vunpack.c.l.b16 %v51
    %v310 = vunpack.c.l.b16 %v52
    %v311 = vunpack.c.l.b16 %v53
    %v312 = vpack.c.b16 %v281, %v280
    %v313 = vpack.c.b16 %v283, %v282
    %v314 = vpack.c.b16 %v285, %v284
    %v315 = vpack.c.b16 %v287, %v286
    %v316 = vpack.c.b16 %v289, %v288
    %v317 = vpack.c.b16 %v291, %v290
    %v318 = vpack.c.b16 %v293, %v292
    %v319 = vpack.c.b16 %v295, %v294
    %v320 = vpack.c.b16 %v297, %v296
    %v321 = vpack.c.b16 %v299, %v298
    %v322 = vpack.c.b16 %v301, %v300
    %v323 = vpack.c.b16 %v303, %v302
    %v324 = vpack.c.b16 %v305, %v304
    %v325 = vpack.c.b16 %v307, %v306
    %v326 = vpack.c.b16 %v309, %v308
    %v327 = vpack.c.b16 %v311, %v310
    %v330 = vunpack.c.l.b16 %v54
    %v331 = vunpack.c.l.b16 %v55
    %v332 = vpack.c.b16 %v331, %v330
    %vm333 = vcmask 89088
    %v335 = vsel %vm333, %v312, 0
    %v338 = vsel %vm333, %v313, 0
    %v341 = vsel %vm333, %v314, 0
    %v344 = vsel %vm333, %v315, 0
    %v347 = vsel %vm333, %v316, 0
    %v350 = vsel %vm333, %v317, 0
    %v353 = vsel %vm333, %v318, 0
    %v356 = vsel %vm333, %v319, 0
    %v359 = vsel %vm333, %v320, 0
    %v362 = vsel %vm333, %v321, 0
    %v365 = vsel %vm333, %v322, 0
    %v368 = vsel %vm333, %v323, 0
    %v371 = vsel %vm333, %v324, 0
    %v374 = vsel %vm333, %v325, 0
    %v377 = vsel %vm333, %v326, 0
    %v380 = vsel %vm333, %v327, 0
    %vm382 = vcmask 1044480
    %vm383 = vcmask 1045504
    %v384 = vsel %vm382, 4294967295, 65535
    %v385 = vsel %vm383, %v384, 0
    %v387 = vand.u32 %v332, %v385
    %389 = vmatpush.bf16.msra.mxu0 0
    %390 = vmatpush.bf16.msra.mxu0 0
    %391 = vmatpush.bf16.msra.mxu0 0
    %392 = vmatpush.bf16.msra.mxu0 0
    %393 = vmatpush.bf16.msra.mxu0 0
    %394 = vmatpush.bf16.msra.mxu0 0
    %395 = vmatpush.bf16.msra.mxu0 0
    %396 = vmatpush.bf16.msra.mxu0 %v387
    %397 = vmatmul.bf16.gmra.mxu0 %v335
    %v398 = vpop.f32.mrf.mxu0
    %v399 = vadd.f32 %v91, %v398
    %v400 = vpop.f32.mrf.mxu0
    %v401 = vadd.f32 %v96, %v400
    %402 = vmatmul.bf16.gmra.mxu0 %v338
    %v403 = vpop.f32.mrf.mxu0
    %v404 = vadd.f32 %v101, %v403
    %v405 = vpop.f32.mrf.mxu0
    %v406 = vadd.f32 %v106, %v405
    %407 = vmatmul.bf16.gmra.mxu0 %v341
    %v408 = vpop.f32.mrf.mxu0
    %v409 = vadd.f32 %v111, %v408
    %v410 = vpop.f32.mrf.mxu0
    %v411 = vadd.f32 %v116, %v410
    %412 = vmatmul.bf16.gmra.mxu0 %v344
    %v413 = vpop.f32.mrf.mxu0
    %v414 = vadd.f32 %v121, %v413
    %v415 = vpop.f32.mrf.mxu0
    %v416 = vadd.f32 %v126, %v415
    %417 = vmatmul.bf16.gmra.mxu0 %v347
    %v418 = vpop.f32.mrf.mxu0
    %v419 = vadd.f32 %v131, %v418
    %v420 = vpop.f32.mrf.mxu0
    %v421 = vadd.f32 %v136, %v420
    %422 = vmatmul.bf16.gmra.mxu0 %v350
    %v423 = vpop.f32.mrf.mxu0
    %v424 = vadd.f32 %v141, %v423
    %v425 = vpop.f32.mrf.mxu0
    %v426 = vadd.f32 %v146, %v425
    %427 = vmatmul.bf16.gmra.mxu0 %v353
    %v428 = vpop.f32.mrf.mxu0
    %v429 = vadd.f32 %v151, %v428
    %v430 = vpop.f32.mrf.mxu0
    %v431 = vadd.f32 %v156, %v430
    %432 = vmatmul.bf16.gmra.mxu0 %v356
    %v433 = vpop.f32.mrf.mxu0
    %v434 = vadd.f32 %v161, %v433
    %v435 = vpop.f32.mrf.mxu0
    %v436 = vadd.f32 %v166, %v435
    %437 = vmatmul.bf16.gmra.mxu0 %v359
    %v438 = vpop.f32.mrf.mxu0
    %v439 = vadd.f32 %v171, %v438
    %v440 = vpop.f32.mrf.mxu0
    %v441 = vadd.f32 %v176, %v440
    %442 = vmatmul.bf16.gmra.mxu0 %v362
    %v443 = vpop.f32.mrf.mxu0
    %v444 = vadd.f32 %v181, %v443
    %v445 = vpop.f32.mrf.mxu0
    %v446 = vadd.f32 %v186, %v445
    %447 = vmatmul.bf16.gmra.mxu0 %v365
    %v448 = vpop.f32.mrf.mxu0
    %v449 = vadd.f32 %v191, %v448
    %v450 = vpop.f32.mrf.mxu0
    %v451 = vadd.f32 %v196, %v450
    %452 = vmatmul.bf16.gmra.mxu0 %v368
    %v453 = vpop.f32.mrf.mxu0
    %v454 = vadd.f32 %v201, %v453
    %v455 = vpop.f32.mrf.mxu0
    %v456 = vadd.f32 %v206, %v455
    %457 = vmatmul.bf16.gmra.mxu0 %v371
    %v458 = vpop.f32.mrf.mxu0
    %v459 = vadd.f32 %v211, %v458
    %v460 = vpop.f32.mrf.mxu0
    %v461 = vadd.f32 %v216, %v460
    %462 = vmatmul.bf16.gmra.mxu0 %v374
    %v463 = vpop.f32.mrf.mxu0
    %v464 = vadd.f32 %v221, %v463
    %v465 = vpop.f32.mrf.mxu0
    %v466 = vadd.f32 %v226, %v465
    %467 = vmatmul.bf16.gmra.mxu0 %v377
    %v468 = vpop.f32.mrf.mxu0
    %v469 = vadd.f32 %v231, %v468
    %v470 = vpop.f32.mrf.mxu0
    %v471 = vadd.f32 %v236, %v470
    %472 = vmatmul.bf16.gmra.mxu0 %v380
    %v473 = vpop.f32.mrf.mxu0
    %v474 = vadd.f32 %v241, %v473
    %v475 = vpop.f32.mrf.mxu0
    %v476 = vadd.f32 %v246, %v475
    %477 = vdwg.mxu0
    %v478 = vmax.f32 %v399, 0.0
    %v479 = vmax.f32 %v401, 0.0
    %v480 = vmax.f32 %v404, 0.0
    %v481 = vmax.f32 %v406, 0.0
    %v482 = vmax.f32 %v409, 0.0
    %v483 = vmax.f32 %v411, 0.0
    %v484 = vmax.f32 %v414, 0.0
    %v485 = vmax.f32 %v416, 0.0
    %v486 = vmax.f32 %v419, 0.0
    %v487 = vmax.f32 %v421, 0.0
    %v488 = vmax.f32 %v424, 0.0
    %v489 = vmax.f32 %v426, 0.0
    %v490 = vmax.f32 %v429, 0.0
    %v491 = vmax.f32 %v431, 0.0
    %v492 = vmax.f32 %v434, 0.0
    %v493 = vmax.f32 %v436, 0.0
    %v494 = vmax.f32 %v439, 0.0
    %v495 = vmax.f32 %v441, 0.0
    %v496 = vmax.f32 %v444, 0.0
    %v497 = vmax.f32 %v446, 0.0
    %v498 = vmax.f32 %v449, 0.0
    %v499 = vmax.f32 %v451, 0.0
    %v500 = vmax.f32 %v454, 0.0
    %v501 = vmax.f32 %v456, 0.0
    %v502 = vmax.f32 %v459, 0.0
    %v503 = vmax.f32 %v461, 0.0
    %v504 = vmax.f32 %v464, 0.0
    %v505 = vmax.f32 %v466, 0.0
    %v506 = vmax.f32 %v469, 0.0
    %v507 = vmax.f32 %v471, 0.0
    %v508 = vmax.f32 %v474, 0.0
    %v509 = vmax.f32 %v476, 0.0
    %v510 = vld [vmem:[%s3] sm:$0xf]
    %v511 = vpack.c.bf16 %v479, %v478
    %v512 = vpack.c.bf16 %v481, %v480
    %v513 = vpack.c.bf16 %v483, %v482
    %v514 = vpack.c.bf16 %v485, %v484
    %v515 = vpack.c.bf16 %v487, %v486
    %v516 = vpack.c.bf16 %v489, %v488
    %v517 = vpack.c.bf16 %v491, %v490
    %v518 = vpack.c.bf16 %v493, %v492
    %v519 = vpack.c.bf16 %v495, %v494
    %v520 = vpack.c.bf16 %v497, %v496
    %v521 = vpack.c.bf16 %v499, %v498
    %v522 = vpack.c.bf16 %v501, %v500
    %v523 = vpack.c.bf16 %v503, %v502
    %v524 = vpack.c.bf16 %v505, %v504
    %v525 = vpack.c.bf16 %v507, %v506
    %v526 = vpack.c.bf16 %v509, %v508
    %v527 = vld [vmem:[%s4] sm:$0x7]
    %529 = vset.pattern.permute.xlu0 0
    %530 = vperm.xlu0 %529, %v527
    %v531 = vpop.permute.xlu0 %530
    %534 = vst [vmem:[#allocation1] ss:$4 sm:$0xff] %v510
    %v535 = vld.sshfl [vmem:[#allocation1] sm:$0xff pattern:$0x73625140]
    %v536 = vld.sshfl [vmem:[#allocation1 + $0x8] sm:$0xff pattern:$0x73625140]
    %539 = vmatpush.bf16.msra.mxu0 %v518
    %540 = vmatpush.bf16.msra.mxu0 %v517
    %541 = vmatpush.bf16.msra.mxu0 %v516
    %542 = vmatpush.bf16.msra.mxu0 %v515
    %543 = vmatpush.bf16.msra.mxu0 %v514
    %544 = vmatpush.bf16.msra.mxu0 %v513
    %545 = vmatpush.bf16.msra.mxu0 %v512
    %546 = vmatpush.bf16.msra.mxu0 %v511
    %547 = vmatmul.bf16.gmra.mxu0 %v535
    %v548 = vpop.f32.mrf.mxu0
    %v549 = vadd.f32 %v531, %v548
    %v550 = vpop.f32.mrf.mxu0
    %551 = vdwg.mxu0
    %552 = vmatpush.bf16.msra.mxu0 %v526
    %553 = vmatpush.bf16.msra.mxu0 %v525
    %554 = vmatpush.bf16.msra.mxu0 %v524
    %555 = vmatpush.bf16.msra.mxu0 %v523
    %556 = vmatpush.bf16.msra.mxu0 %v522
    %557 = vmatpush.bf16.msra.mxu0 %v521
    %558 = vmatpush.bf16.msra.mxu0 %v520
    %559 = vmatpush.bf16.msra.mxu0 %v519
    %560 = vmatmul.bf16.gmra.mxu0 %v536
    %v561 = vpop.f32.mrf.mxu0
    %v562 = vadd.f32 %v549, %v561
    %v563 = vpop.f32.mrf.mxu0
    %564 = vdwg.mxu0
    %565 = vst [vmem:[#allocation2] sm:$0x7] %v562
    // Predicated region
    $region22: #{tpu_custom_call.1} parent=1 // pred_check
      _
    $region23: #{tpu_custom_call.1} parent=1 // pred_check_branch
      %567 = sbr.rel (0) target = $region25
    $region24: #{tpu_custom_call.1} parent=1 // pred_region
      %569 = vsyncadd [#allocation3], 0
      %s571 = sshll.u32 [#allocation2], 4
      %s572 = int_to_ptr.vmem [resolvable:$true] %s571
      %s573 = sshll.u32 %s5, 4
      %s574 = int_to_ptr.hbm [resolvable:$true] %s573
      %576 = dma.vmem_to_hbm [thread:$0]  %s572, 64, %s574, [#allocation3]
    $region25: #{tpu_custom_call.1} parent=1 // pred_fallthru
      _
    // Predicated region
    $region26: #{tpu_custom_call.1} parent=1 // pred_check
      _
    $region27: #{tpu_custom_call.1} parent=1 // pred_check_branch
      %578 = sbr.rel (0) target = $region29
    $region28: #{tpu_custom_call.1} parent=1 // pred_region
      %580 = dma.done [#allocation3], 64
    $region29: #{tpu_custom_call.1} parent=1 // pred_fallthru
      _
    %581 = vsyncpa [#allocation3], 1

</llo_original>
